<compile_context>
chip_gen: v5e
topology: v5e:2x2
jax: 0.10.0
libtpu: 0.0.40
codegen_flags: <defaults>
</compile_context>

<pallas_src>
import jax
import jax.numpy as jnp
from jax.experimental import pallas as pl
from jax.experimental.pallas import tpu as pltpu


def conv_relu_tanh_kernel(w_ref, x_ref, b_ref, o_ref):
    # (Cout, K) @ (K, P) on the MXU -> lane-dense (Cout, P) accumulator.
    acc = jnp.dot(w_ref[...], x_ref[...], preferred_element_type=jnp.float32)
    acc = acc + b_ref[...]          # (Cout, 1) broadcasts across the P lanes
    acc = jnp.maximum(acc, 0.0)     # ReLU (VALU)
    o_ref[...] = jnp.tanh(acc).astype(o_ref.dtype)  # tanh (EUP)


def model_tanh(x, w, b):
    """x: (N, Cin, H, W) float32; w: (Cout, Cin, 2, 2); b: (Cout,)."""
    N, C_in, H, W = x.shape
    C_out, _, KH, KW = w.shape
    S = 2
    OH = (H - KH) // S + 1
    OW = (W - KW) // S + 1

    # im2col for stride==kernel==2, built directly in (K, P) layout:
    # K = Cin*KH*KW contraction dim, P = N*OH*OW lane-dense output dim.
    xc = x[:, :, : OH * S, : OW * S]
    patches = xc.reshape(N, C_in, OH, KH, OW, KW)
    patches = patches.transpose(1, 3, 5, 0, 2, 4)            # (Cin, KH, KW, N, OH, OW)
    patches = patches.reshape(C_in * KH * KW, N * OH * OW)   # (K, P)

    wmat = w.reshape(C_out, C_in * KH * KW)                  # (Cout, K), same (Cin,KH,KW) order
    bcol = b.reshape(C_out, 1)                               # broadcasts over lanes

    K, P = patches.shape
    out = pl.pallas_call(
        conv_relu_tanh_kernel,
        out_shape=jax.ShapeDtypeStruct((C_out, P), x.dtype),
        in_specs=[
            pl.BlockSpec(memory_space=pltpu.MemorySpace.VMEM),  # wmat  (4, 40)
            pl.BlockSpec(memory_space=pltpu.MemorySpace.VMEM),  # patches (40, 256)
            pl.BlockSpec(memory_space=pltpu.MemorySpace.VMEM),  # bias  (4, 1)
        ],
        out_specs=pl.BlockSpec(memory_space=pltpu.MemorySpace.VMEM),
    )(wmat, patches, bcol)

    # (Cout, N*OH*OW) -> (N, Cout, OH, OW).  For N == 1 the transpose of the
    # size-1 axis is layout-free, so this is effectively just a reshape.
    return out.reshape(C_out, N, OH, OW).transpose(1, 0, 2, 3)


def _reference(x, w, b):
    y = jax.lax.conv_general_dilated(
        x, w, window_strides=(2, 2), padding="VALID",
        dimension_numbers=("NCHW", "OIHW", "NCHW"))
    y = y + b.reshape(1, -1, 1, 1)
    return jnp.tanh(jnp.maximum(y, 0.0))


if __name__ == "__main__":
    key = jax.random.PRNGKey(0)
    kx, kw, kb = jax.random.split(key, 3)

    # Shapes implied by the PyTorch module: x (1,10,33,33), Conv2d(10,4,2,stride=2).
    x = jax.random.normal(kx, (1, 10, 33, 33), dtype=jnp.float32)
    w = jax.random.normal(kw, (4, 10, 2, 2), dtype=jnp.float32) * 0.1
    b = jax.random.normal(kb, (4,), dtype=jnp.float32) * 0.1

    out = model_tanh(x, w, b)
    out = jax.block_until_ready(out)

    ref = jax.block_until_ready(_reference(x, w, b))
    assert out.shape == (1, 4, 16, 16), out.shape
    assert jnp.allclose(out, ref, atol=1e-5, rtol=1e-5), "mismatch vs reference"

    print("KERNEL_OK")
</pallas_src>

<mosaic_0001>
module attributes {stable_mosaic.version = 11 : i64} {
  func.func @conv_relu_tanh_kernel(%arg0: memref<4x40xf32, #tpu.memory_space<vmem>>, %arg1: memref<40x256xf32, #tpu.memory_space<vmem>>, %arg2: memref<4x1xf32, #tpu.memory_space<vmem>>, %arg3: memref<4x256xf32, #tpu.memory_space<vmem>>) attributes {dimension_semantics = [], scalar_prefetch = 0 : i64, scratch_operands = 0 : i64, tpu.core_type = #tpu.core_type<tc>} {
    %c0 = arith.constant 0 : index
    %c0_0 = arith.constant 0 : index
    %0 = vector.load %arg0[%c0, %c0_0] : memref<4x40xf32, #tpu.memory_space<vmem>>, vector<4x40xf32>
    %c0_1 = arith.constant 0 : index
    %c0_2 = arith.constant 0 : index
    %1 = vector.load %arg1[%c0_1, %c0_2] : memref<40x256xf32, #tpu.memory_space<vmem>>, vector<40x256xf32>
    %cst = arith.constant dense<0.000000e+00> : vector<4x256xf32>
    %2 = tpu.matmul %0, %1, %cst {dimension_numbers = #tpu.dot_dimension_numbers<[1], [0], [0], [1], [0, 0, 1, 1], [], []>} : vector<4x40xf32>, vector<40x256xf32>, vector<4x256xf32> -> vector<4x256xf32>
    %c0_3 = arith.constant 0 : index
    %c0_4 = arith.constant 0 : index
    %3 = vector.load %arg2[%c0_3, %c0_4] : memref<4x1xf32, #tpu.memory_space<vmem>>, vector<4x1xf32>
    %4 = vector.broadcast %3 : vector<4x1xf32> to vector<4x256xf32>
    %5 = arith.addf %2, %4 : vector<4x256xf32>
    %cst_5 = arith.constant 0.000000e+00 : f32
    %6 = vector.broadcast %cst_5 : f32 to vector<4x256xf32>
    %7 = arith.maximumf %5, %6 : vector<4x256xf32>
    %8 = math.tanh %7 : vector<4x256xf32>
    %c0_6 = arith.constant 0 : index
    %c0_7 = arith.constant 0 : index
    %9 = vector.load %arg3[%c0_6, %c0_7] : memref<4x256xf32, #tpu.memory_space<vmem>>, vector<4x256xf32>
    tpu.vector_store %arg3[%c0_6, %c0_7], %8 {strides = array<i32>} : memref<4x256xf32, #tpu.memory_space<vmem>>, vector<4x256xf32>,
    return
  }
}

</mosaic_0001>

<llo_original>
// kernel: tpu_custom_call.1
$region0: #{tpu_custom_call.1}
  #allocation0 [shape = 'u32[]', space=smem, size = 0x4, offset = 0x4, fixed_abs, tag = 'smem constant byte address 0x4 - core index']
  #allocation1 [shape = 'u32[72,128]{1,0:T(1,128)}', space=vmem, size = 0x9000, scoped, tag = 'internal scratch']
  %s0 = inlined_call_operand.vmem [shape: f32[4,40], index: 0, kind: input, shape index: {}]
  %s1 = inlined_call_operand.hbm [shape: f32[40,256], index: 1, kind: input, shape index: {}]
  %s2 = inlined_call_operand.vmem [shape: f32[4,1], index: 2, kind: input, shape index: {}]
  %s3 = inlined_call_operand.hbm [shape: f32[4,256], index: 3, kind: output, shape index: {}]
  %s4 = sld [smem:[#allocation0]]
  $region26: #{tpu_custom_call.1} parent=0
    _
  %s6 = ssub.s32 1, %s4
  %s7 = scalar_select 0, %s6, %s4
  $region1: #{tpu_custom_call.1} parent=0
    #allocation2 [shape = 'u8[40960]{0}', space=vmem, size = 0xa000, scoped, tag = 'input window, operand 1, single buffered']
    #allocation3 [shape = 's32[1]{0}', space=sflag, size = 0x4, scoped, tag = 'scoped memory for tpu_custom_call.1']
    #allocation4 [shape = 's32[1]{0}', space=sflag, size = 0x4, scoped, tag = 'scoped memory for tpu_custom_call.1']
    #allocation5 [shape = 'u8[4096]{0}', space=vmem, size = 0x1000, scoped, tag = 'output window, operand 0, single buffered']
    %8 = vsyncpa [#allocation3], 0
    %9 = vsyncpa [#allocation4], 0
    // Predicated region
    $region2: #{tpu_custom_call.1} parent=1 // pred_check
      _
    $region3: #{tpu_custom_call.1} parent=1 // pred_check_branch
      %11 = sbr.rel (0) target = $region5
    $region4: #{tpu_custom_call.1} parent=1 // pred_region
      _
    $region5: #{tpu_custom_call.1} parent=1 // pred_fallthru
      _
    // Predicated region
    $region6: #{tpu_custom_call.1} parent=1 // pred_check
      _
    $region7: #{tpu_custom_call.1} parent=1 // pred_check_branch
      %13 = sbr.rel (0) target = $region9
    $region8: #{tpu_custom_call.1} parent=1 // pred_region
      %15 = vsyncadd [#allocation3], 0
      %s16 = sshll.u32 %s1, 4
      %s17 = int_to_ptr.hbm [resolvable:$true] %s16
      %s18 = sshll.u32 [#allocation2], 4
      %s19 = int_to_ptr.vmem [resolvable:$true] %s18
      %24 = dma.hbm_to_vmem [thread:$0]  %s17, 1280, %s19, [#allocation3], 256, 256, 16
    $region9: #{tpu_custom_call.1} parent=1 // pred_fallthru
      _
    // Predicated region
    $region10: #{tpu_custom_call.1} parent=1 // pred_check
      _
    $region11: #{tpu_custom_call.1} parent=1 // pred_check_branch
      %26 = sbr.rel (0) target = $region13
    $region12: #{tpu_custom_call.1} parent=1 // pred_region
      _
    $region13: #{tpu_custom_call.1} parent=1 // pred_fallthru
      _
    // Predicated region
    $region14: #{tpu_custom_call.1} parent=1 // pred_check
      _
    $region15: #{tpu_custom_call.1} parent=1 // pred_check_branch
      %28 = sbr.rel (0) target = $region17
    $region16: #{tpu_custom_call.1} parent=1 // pred_region
      %30 = dma.done [#allocation3], 1280
    $region17: #{tpu_custom_call.1} parent=1 // pred_fallthru
      _
    %v31 = vld [vmem:[%s0] sm:$0xf]
    %v32 = vld [vmem:[#allocation2] sm:$0xff]
    %v33 = vld [vmem:[#allocation2 + $0x8] sm:$0xff]
    %v34 = vld [vmem:[#allocation2 + $0x10] sm:$0xff]
    %v35 = vld [vmem:[#allocation2 + $0x18] sm:$0xff]
    %v36 = vld [vmem:[#allocation2 + $0x20] sm:$0xff]
    %v37 = vld [vmem:[#allocation2 + $0x28] sm:$0xff]
    %v38 = vld [vmem:[#allocation2 + $0x30] sm:$0xff]
    %v39 = vld [vmem:[#allocation2 + $0x38] sm:$0xff]
    %v40 = vld [vmem:[#allocation2 + $0x40] sm:$0xff]
    %v41 = vld [vmem:[#allocation2 + $0x48] sm:$0xff]
    %v42 = vld [vmem:[%s2] sm:$0xf]
    %44 = vset.pattern.permute.xlu0 0
    %45 = vperm.xlu0 %44, %v42
    %v46 = vpop.permute.xlu0 %45
    %vm48 = vcmask 326656
    %v50 = vsel %vm48, %v31, 0
    %52 = vmatpush.msra.mxu0 0.0
    %53 = vmatpush.msra.mxu0 0.0
    %54 = vmatpush.msra.mxu0 0.0
    %55 = vmatpush.msra.mxu0 0.0
    %56 = vmatpush.msra.mxu0 0.0
    %57 = vmatpush.msra.mxu0 0.0
    %58 = vmatpush.msra.mxu0 0.0
    %59 = vmatpush.msra.mxu0 0.0
    %60 = vmatpush.msra.mxu0 0.0
    %61 = vmatpush.msra.mxu0 0.0
    %62 = vmatpush.msra.mxu0 0.0
    %63 = vmatpush.msra.mxu0 %v40
    %64 = vmatpush.msra.mxu0 %v38
    %65 = vmatpush.msra.mxu0 %v36
    %66 = vmatpush.msra.mxu0 %v34
    %67 = vmatpush.msra.mxu0 %v32
    %68 = vmatmul.f32.gmra.mxu0 %v50
    %v69 = vpop.f32.mrf.mxu0
    %v70 = vadd.f32 %v46, %v69
    %71 = vdwg.mxu0
    %72 = vmatpush.msra.mxu0 0.0
    %73 = vmatpush.msra.mxu0 0.0
    %74 = vmatpush.msra.mxu0 0.0
    %75 = vmatpush.msra.mxu0 0.0
    %76 = vmatpush.msra.mxu0 0.0
    %77 = vmatpush.msra.mxu0 0.0
    %78 = vmatpush.msra.mxu0 0.0
    %79 = vmatpush.msra.mxu0 0.0
    %80 = vmatpush.msra.mxu0 0.0
    %81 = vmatpush.msra.mxu0 0.0
    %82 = vmatpush.msra.mxu0 0.0
    %83 = vmatpush.msra.mxu0 %v41
    %84 = vmatpush.msra.mxu0 %v39
    %85 = vmatpush.msra.mxu0 %v37
    %86 = vmatpush.msra.mxu0 %v35
    %87 = vmatpush.msra.mxu0 %v33
    %88 = vmatmul.f32.gmra.mxu0 %v50
    %v89 = vpop.f32.mrf.mxu0
    %v90 = vadd.f32 %v46, %v89
    %91 = vdwg.mxu0
    %v92 = vmax.f32 %v70, 0.0
    %v93 = vmax.f32 %v90, 0.0
    %v94 = vtanh.pop %v92
    %v95 = vtanh.pop %v93
    %v98 = vrot.slane %v95, 4
    %vm99 = vcmask 1043456
    %v100 = vsel %vm99, %v94, %v98
    %102 = vst [vmem:[#allocation5] sm:$0xff] %v100
    // Predicated region
    $region18: #{tpu_custom_call.1} parent=1 // pred_check
      _
    $region19: #{tpu_custom_call.1} parent=1 // pred_check_branch
      %104 = sbr.rel (0) target = $region21
    $region20: #{tpu_custom_call.1} parent=1 // pred_region
      %106 = vsyncadd [#allocation4], 0
      %s108 = sshll.u32 [#allocation5], 4
      %s109 = int_to_ptr.vmem [resolvable:$true] %s108
      %s110 = sshll.u32 %s3, 4
      %s111 = int_to_ptr.hbm [resolvable:$true] %s110
      %113 = dma.vmem_to_hbm [thread:$0]  %s109, 128, %s111, [#allocation4]
    $region21: #{tpu_custom_call.1} parent=1 // pred_fallthru
      _
    // Predicated region
    $region22: #{tpu_custom_call.1} parent=1 // pred_check
      _
    $region23: #{tpu_custom_call.1} parent=1 // pred_check_branch
      %115 = sbr.rel (0) target = $region25
    $region24: #{tpu_custom_call.1} parent=1 // pred_region
      %117 = dma.done [#allocation4], 128
    $region25: #{tpu_custom_call.1} parent=1 // pred_fallthru
      _
    %118 = vsyncpa [#allocation3], 1
    %119 = vsyncpa [#allocation4], 1

</llo_original>
